<compile_context>
chip_gen: v6e
topology: v6e:2x2x1
jax: 0.10.0
libtpu: 0.0.40
codegen_flags: <defaults>
</compile_context>

<pallas_src>
import functools

import numpy as np
import jax
import jax.numpy as jnp
from jax.experimental import pallas as pl
from jax.experimental.pallas import tpu as pltpu

NUM_CH = 20      # prediction channels: 19 classes + 1 reservation (OOD) channel
RES_CH = 5       # index of the reservation channel
CLAMP = 1e-7
IGNORE = 255


def _gambler_kernel(flag_ref, pred_ref, tgt_ref, acc_ref,
                    *, wrong_sample: bool, ood_reg: float, n_pix: int):
    # pred_ref: (NUM_CH, T) logits, channel-major (channels on sublanes, pixels on lanes)
    # tgt_ref : (1, T) int32 labels
    # acc_ref : (4, T) f32 per-lane partial accumulators, resident across the pixel axis:
    #           row 0: sum(log inlier)   row 1: inlier count
    #           row 2: ood_reg*sum(log boost)   row 3: boost count
    b = pl.program_id(0)
    i = pl.program_id(1)

    @pl.when(i == 0)
    def _init():
        acc_ref[...] = jnp.zeros_like(acc_ref)

    logits = pred_ref[...].astype(jnp.float32)
    tgt = tgt_ref[...]
    T = logits.shape[1]

    # mask for the ragged tail of the last pixel tile (pred is never padded in HBM)
    lane_valid = (jax.lax.broadcasted_iota(jnp.int32, (1, T), 1) + i * T) < n_pix

    # softmax over the channel axis, then torch.clamp(min=1e-7)
    mx = jnp.max(logits, axis=0, keepdims=True)
    ex = jnp.exp(logits - mx)
    inv_den = pl.reciprocal(jnp.sum(ex, axis=0, keepdims=True), approx=True)
    prob = jnp.maximum(ex * inv_den, CLAMP)

    ch = jax.lax.broadcasted_iota(jnp.int32, prob.shape, 0)
    not_res = ch != RES_CH                                  # 19 "true_pred" channels

    reservation = prob[RES_CH:RES_CH + 1, :]                # (1, T)

    # reward = logsumexp(true_pred, dim=channel) ** 2.  After the clamp,
    # prob ∈ [1e-7, 1] so exp(prob) ∈ [1, e]: no max-subtraction needed.
    lse = jnp.log(jnp.sum(jnp.where(not_res, jnp.exp(prob), 0.0),
                          axis=0, keepdims=True))
    reward = lse * lse
    # TODO(synk): torch falls back to self.reward only when the prediction is
    # empty (reward.nelement() == 0); that degenerate case is not reachable here.
    reservation = reservation * pl.reciprocal(reward, approx=True)

    if not wrong_sample:
        ignore = tgt == IGNORE
        t = jnp.where(ignore, 0, tgt)
        # torch gathers from true_pred (channel 5 removed) WITHOUT shifting,
        # so true_pred[k] == prob[k + (k >= 5)]
        orig_ch = t + (t >= RES_CH).astype(jnp.int32)
        gathered = jnp.sum(jnp.where(ch == orig_ch, prob, 0.0),
                           axis=0, keepdims=True)
        logv = jnp.log(jnp.maximum(gathered + reservation, 1e-30))
        valid = jnp.logical_and(jnp.logical_not(ignore), lane_valid)
        acc_ref[0:1, :] += jnp.where(valid, logv, 0.0)
        acc_ref[1:2, :] += valid.astype(jnp.float32)
    else:
        # TODO(synk): a 255 (ignore) label in the OOD path indexes out of bounds
        # in the PyTorch reference, so it is intentionally not special-cased here.
        ood_mask = tgt == RES_CH
        void_mask = tgt == 0

        # OOD "reserve boosting": all 19 true_pred channels at OOD pixels.
        # Gated by a scalar-prefetched per-tile flag so OOD-free tiles skip the log.
        @pl.when(flag_ref[b, i] > 0)
        def _boost():
            boost = jnp.log(jnp.maximum(prob + reservation, CLAMP))
            sel = jnp.logical_and(jnp.logical_and(ood_mask, lane_valid), not_res)
            acc_ref[2:3, :] += ood_reg * jnp.sum(jnp.where(sel, boost, 0.0),
                                                 axis=0, keepdims=True)
            acc_ref[3:4, :] += jnp.sum(sel.astype(jnp.float32),
                                       axis=0, keepdims=True)

        # inlier term: gather true_pred at the shifted target index
        t = jnp.where(ood_mask, 0, tgt)
        shifted = jnp.where(t > RES_CH, t - 1, t)
        orig_ch = shifted + (shifted >= RES_CH).astype(jnp.int32)
        gathered = jnp.sum(jnp.where(ch == orig_ch, prob, 0.0),
                           axis=0, keepdims=True)
        logv = jnp.log(jnp.maximum(gathered + reservation, 1e-30))
        valid = jnp.logical_and(
            lane_valid, jnp.logical_not(jnp.logical_or(ood_mask, void_mask)))
        acc_ref[0:1, :] += jnp.where(valid, logv, 0.0)
        acc_ref[1:2, :] += valid.astype(jnp.float32)


def gambler_loss(pred, targets, *, wrong_sample=False, ood_reg=0.1, tile=4096):
    # `pred` keeps its PyTorch NC[D]HW layout — (B, 20, *spatial); `targets` is
    # (B, *spatial) int labels.  Both are only reshaped (metadata-only: no
    # transpose, no pad of pred).  The kernel streams (20, tile) channel-major
    # blocks — pixels on the 128-wide lane axis, channels on sublanes — and the
    # grid is (batch [parallel], pixel tiles [arbitrary reduction]).
    B, C = pred.shape[0], pred.shape[1]
    assert C == NUM_CH
    S = int(np.prod(pred.shape[2:]))
    pred3 = pred.reshape(B, C, S)
    tgt3 = targets.reshape(B, 1, S).astype(jnp.int32)

    # tile: multiple of 128, capped at the 128-rounded pixel count
    s_pad = -(-S // 128) * 128
    tile = min(int(tile), s_pad)
    tile = max(128, (tile // 128) * 128)
    nblk = -(-S // tile)

    # per-(batch, tile) "tile contains an OOD pixel" flags for the boost gate
    if wrong_sample:
        pad = nblk * tile - S
        t_pad = jnp.pad(targets.reshape(B, S).astype(jnp.int32),
                        ((0, 0), (0, pad)), constant_values=-1)
        flags = jnp.any(t_pad.reshape(B, nblk, tile) == RES_CH,
                        axis=-1).astype(jnp.int32)
    else:
        flags = jnp.zeros((B, nblk), jnp.int32)

    kernel = functools.partial(_gambler_kernel, wrong_sample=wrong_sample,
                               ood_reg=float(ood_reg), n_pix=S)
    acc = pl.pallas_call(
        kernel,
        out_shape=jax.ShapeDtypeStruct((B, 4, tile), jnp.float32),
        grid_spec=pltpu.PrefetchScalarGridSpec(
            num_scalar_prefetch=1,
            grid=(B, nblk),
            in_specs=[pl.BlockSpec((None, C, tile), lambda b, i, f: (b, 0, i)),
                      pl.BlockSpec((None, 1, tile), lambda b, i, f: (b, 0, i))],
            out_specs=pl.BlockSpec((None, 4, tile), lambda b, i, f: (b, 0, 0))),
        compiler_params=pltpu.CompilerParams(
            dimension_semantics=("parallel", "arbitrary")),
    )(flags, pred3, tgt3)

    sums = jnp.sum(acc, axis=(0, 2))            # tiny reduction: (4,)
    in_mean = sums[0] / sums[1]
    if wrong_sample:
        out_mean = jnp.where(sums[3] > 0,
                             sums[2] / jnp.maximum(sums[3], 1.0), 0.0)
        return -(in_mean + out_mean)
    return -in_mean


class Gambler:
    """JAX/Pallas re-implementation of the PyTorch `Gambler` module (no weights)."""

    def __init__(self, reward, pretrain=-1, ood_reg=0.1):
        self.reward = float(reward)   # only used by torch when the prediction is empty
        self.pretrain = pretrain
        self.ood_reg = ood_reg

    def __call__(self, pred, targets, wrong_sample=False):
        return gambler_loss(pred, targets, wrong_sample=wrong_sample,
                            ood_reg=self.ood_reg)


def _gambler_ref_np(pred, targets, wrong_sample, ood_reg):
    """NumPy reference reproducing the PyTorch forward exactly."""
    pred = np.asarray(pred, dtype=np.float64)
    targets = np.asarray(targets).copy()
    ex = np.exp(pred - pred.max(axis=1, keepdims=True))
    prob = ex / ex.sum(axis=1, keepdims=True)
    prob = np.clip(prob, 1e-7, None)
    true_pred = np.concatenate([prob[:, :5], prob[:, 6:]], axis=1)
    reservation = prob[:, 5]
    m = true_pred.max(axis=1)
    lse = m + np.log(np.exp(true_pred - m[:, None]).sum(axis=1))
    reward = lse ** 2
    reservation = reservation / reward
    if wrong_sample:
        mask = targets == 5
        rbe = true_pred + reservation[:, None]
        sel = np.broadcast_to(mask[:, None], rbe.shape)
        rbe_sel = rbe[sel]
        out_mean = 0.0
        if rbe_sel.size > 0:
            out_mean = (ood_reg * np.log(np.clip(rbe_sel, 1e-7, None))).mean()
        void_mask = targets == 0
        targets[mask] = 0
        shifted = targets.copy()
        shifted[shifted > 5] -= 1
        gathered = np.take_along_axis(true_pred, shifted[:, None], axis=1).squeeze(1)
        gl = gathered + reservation
        in_mean = np.log(gl[~mask & ~void_mask]).mean()
        return -(in_mean + out_mean)
    else:
        mask = targets == 255
        targets[mask] = 0
        gathered = np.take_along_axis(true_pred, targets[:, None], axis=1).squeeze(1)
        gl = gathered + reservation
        return -np.log(gl[~mask]).mean()


if __name__ == "__main__":
    key = jax.random.PRNGKey(0)
    B, C, D1, D2, D3 = 2, NUM_CH, 4, 8, 8
    k1, k2, k3 = jax.random.split(key, 3)
    pred = jax.random.normal(k1, (B, C, D1, D2, D3), dtype=jnp.float32)
    base_targets = jax.random.randint(k2, (B, D1, D2, D3), 0, 19, dtype=jnp.int32)
    ignore = jax.random.bernoulli(k3, 0.1, (B, D1, D2, D3))
    targets_std = jnp.where(ignore, 255, base_targets).astype(jnp.int32)
    targets_ood = base_targets          # contains class-5 (OOD) and class-0 (void)

    gambler = Gambler(reward=4.5, ood_reg=0.1)
    loss_std = gambler(pred, targets_std, wrong_sample=False)
    loss_ood = gambler(pred, targets_ood, wrong_sample=True)
    jax.block_until_ready((loss_std, loss_ood))

    ref_std = _gambler_ref_np(pred, targets_std, False, 0.1)
    ref_ood = _gambler_ref_np(pred, targets_ood, True, 0.1)
    # tolerances account for the EUP approx reciprocals (softmax denom / reward)
    np.testing.assert_allclose(float(loss_std), ref_std, rtol=2e-3, atol=1e-3)
    np.testing.assert_allclose(float(loss_ood), ref_ood, rtol=2e-3, atol=1e-3)
    print("KERNEL_OK")
</pallas_src>

<mosaic_0001>
module attributes {stable_mosaic.version = 11 : i64} {
  func.func @_gambler_kernel(%arg0: i32, %arg1: i32, %arg2: memref<2x1xi32, #tpu.memory_space<smem>>, %arg3: memref<1x20x256xf32, #tpu.memory_space<vmem>>, %arg4: memref<1x1x256xi32, #tpu.memory_space<vmem>>, %arg5: memref<1x4x256xf32, #tpu.memory_space<vmem>>) attributes {dimension_semantics = [#tpu.dimension_semantics<parallel>, #tpu.dimension_semantics<arbitrary>], iteration_bounds = array<i64: 2, 1>, scalar_prefetch = 1 : i64, scratch_operands = 0 : i64, tpu.core_type = #tpu.core_type<tc>, window_params = [{transform_indices = @transform_0, window_bounds = array<i64: 1, 20, 256>}, {transform_indices = @transform_1, window_bounds = array<i64: 1, 1, 256>}, {transform_indices = @transform_2, window_bounds = array<i64: 1, 4, 256>}]} {
    %c0_i32 = arith.constant 0 : i32
    %0 = arith.cmpi eq, %arg1, %c0_i32 : i32
    %1 = arith.extui %0 : i1 to i32
    %c0_i32_0 = arith.constant 0 : i32
    %2 = arith.cmpi ne, %1, %c0_i32_0 : i32
    scf.if %2 {
      %cst_29 = arith.constant 0.000000e+00 : f32
      %74 = vector.broadcast %cst_29 : f32 to vector<4x256xf32>
      %c0_30 = arith.constant 0 : index
      %c0_31 = arith.constant 0 : index
      %c0_32 = arith.constant 0 : index
      %75 = vector.load %arg5[%c0_30, %c0_31, %c0_32] : memref<1x4x256xf32, #tpu.memory_space<vmem>>, vector<1x4x256xf32>
      %76 = vector.shape_cast %75 : vector<1x4x256xf32> to vector<4x256xf32>
      %77 = vector.shape_cast %74 : vector<4x256xf32> to vector<1x4x256xf32>
      tpu.vector_store %arg5[%c0_30, %c0_31, %c0_32], %77 {strides = array<i32>} : memref<1x4x256xf32, #tpu.memory_space<vmem>>, vector<1x4x256xf32>,
    } else {
    }
    %c0 = arith.constant 0 : index
    %c0_1 = arith.constant 0 : index
    %c0_2 = arith.constant 0 : index
    %3 = vector.load %arg3[%c0, %c0_1, %c0_2] : memref<1x20x256xf32, #tpu.memory_space<vmem>>, vector<1x20x256xf32>
    %4 = vector.shape_cast %3 : vector<1x20x256xf32> to vector<20x256xf32>
    %c0_3 = arith.constant 0 : index
    %c0_4 = arith.constant 0 : index
    %c0_5 = arith.constant 0 : index
    %5 = vector.load %arg4[%c0_3, %c0_4, %c0_5] : memref<1x1x256xi32, #tpu.memory_space<vmem>>, vector<1x1x256xi32>
    %6 = vector.shape_cast %5 : vector<1x1x256xi32> to vector<1x256xi32>
    %7 = tpu.iota {dimensions = array<i32: 1>} : vector<1x256xi32>
    %c256_i32 = arith.constant 256 : i32
    %8 = arith.muli %arg1, %c256_i32 : i32
    %9 = vector.broadcast %8 : i32 to vector<1x256xi32>
    %10 = arith.addi %7, %9 : vector<1x256xi32>
    %c256_i32_6 = arith.constant 256 : i32
    %11 = vector.broadcast %c256_i32_6 : i32 to vector<1x256xi32>
    %12 = arith.cmpi slt, %10, %11 : vector<1x256xi32>
    %cst = arith.constant dense<0xFF800000> : vector<256xf32>
    %13 = vector.multi_reduction <maximumf>, %4, %cst [0] : vector<20x256xf32> to vector<256xf32>
    %14 = vector.shape_cast %13 : vector<256xf32> to vector<1x256xf32>
    %15 = vector.broadcast %14 : vector<1x256xf32> to vector<20x256xf32>
    %16 = arith.subf %4, %15 : vector<20x256xf32>
    %17 = math.exp %16 : vector<20x256xf32>
    %cst_7 = arith.constant dense<0.000000e+00> : vector<256xf32>
    %18 = vector.multi_reduction <add>, %17, %cst_7 [0] : vector<20x256xf32> to vector<256xf32>
    %19 = vector.shape_cast %18 : vector<256xf32> to vector<1x256xf32>
    %20 = tpu.reciprocal %19 {approx = true} : vector<1x256xf32> -> vector<1x256xf32>
    %21 = vector.broadcast %20 : vector<1x256xf32> to vector<20x256xf32>
    %22 = arith.mulf %17, %21 : vector<20x256xf32>
    %cst_8 = arith.constant 1.000000e-07 : f32
    %23 = vector.broadcast %cst_8 : f32 to vector<20x256xf32>
    %24 = arith.maximumf %22, %23 : vector<20x256xf32>
    %25 = tpu.iota {dimensions = array<i32: 0>} : vector<20x256xi32>
    %c5_i32 = arith.constant 5 : i32
    %26 = vector.broadcast %c5_i32 : i32 to vector<20x256xi32>
    %27 = arith.cmpi ne, %25, %26 : vector<20x256xi32>
    %28 = vector.extract_strided_slice %24 {offsets = [5, 0], sizes = [1, 256], strides = [1, 1]} : vector<20x256xf32> to vector<1x256xf32>
    %29 = math.exp %24 : vector<20x256xf32>
    %cst_9 = arith.constant 0.000000e+00 : f32
    %30 = vector.broadcast %cst_9 : f32 to vector<20x256xf32>
    %31 = arith.select %27, %29, %30 : vector<20x256xi1>, vector<20x256xf32>
    %cst_10 = arith.constant dense<0.000000e+00> : vector<256xf32>
    %32 = vector.multi_reduction <add>, %31, %cst_10 [0] : vector<20x256xf32> to vector<256xf32>
    %33 = vector.shape_cast %32 : vector<256xf32> to vector<1x256xf32>
    %34 = math.log %33 : vector<1x256xf32>
    %35 = arith.mulf %34, %34 : vector<1x256xf32>
    %36 = tpu.reciprocal %35 {approx = true} : vector<1x256xf32> -> vector<1x256xf32>
    %37 = arith.mulf %28, %36 : vector<1x256xf32>
    %c255_i32 = arith.constant 255 : i32
    %38 = vector.broadcast %c255_i32 : i32 to vector<1x256xi32>
    %39 = arith.cmpi eq, %6, %38 : vector<1x256xi32>
    %c0_i32_11 = arith.constant 0 : i32
    %40 = vector.broadcast %c0_i32_11 : i32 to vector<1x256xi32>
    %41 = arith.select %39, %40, %6 : vector<1x256xi1>, vector<1x256xi32>
    %c5_i32_12 = arith.constant 5 : i32
    %42 = vector.broadcast %c5_i32_12 : i32 to vector<1x256xi32>
    %43 = arith.cmpi sge, %41, %42 : vector<1x256xi32>
    %44 = arith.extui %43 : vector<1x256xi1> to vector<1x256xi32>
    %45 = arith.addi %41, %44 : vector<1x256xi32>
    %46 = vector.broadcast %45 : vector<1x256xi32> to vector<20x256xi32>
    %47 = arith.cmpi eq, %25, %46 : vector<20x256xi32>
    %cst_13 = arith.constant 0.000000e+00 : f32
    %48 = vector.broadcast %cst_13 : f32 to vector<20x256xf32>
    %49 = arith.select %47, %24, %48 : vector<20x256xi1>, vector<20x256xf32>
    %cst_14 = arith.constant dense<0.000000e+00> : vector<256xf32>
    %50 = vector.multi_reduction <add>, %49, %cst_14 [0] : vector<20x256xf32> to vector<256xf32>
    %51 = vector.shape_cast %50 : vector<256xf32> to vector<1x256xf32>
    %52 = arith.addf %51, %37 : vector<1x256xf32>
    %cst_15 = arith.constant 1.000000e-30 : f32
    %53 = vector.broadcast %cst_15 : f32 to vector<1x256xf32>
    %54 = arith.maximumf %52, %53 : vector<1x256xf32>
    %55 = math.log %54 : vector<1x256xf32>
    %cst_16 = arith.constant dense<true> : vector<1x256xi1>
    %56 = arith.xori %39, %cst_16 : vector<1x256xi1>
    %57 = arith.andi %56, %12 : vector<1x256xi1>
    %c0_17 = arith.constant 0 : index
    %c0_18 = arith.constant 0 : index
    %c0_19 = arith.constant 0 : index
    %58 = vector.load %arg5[%c0_17, %c0_18, %c0_19] : memref<1x4x256xf32, #tpu.memory_space<vmem>>, vector<1x1x256xf32>
    %59 = vector.shape_cast %58 : vector<1x1x256xf32> to vector<1x256xf32>
    %cst_20 = arith.constant 0.000000e+00 : f32
    %60 = vector.broadcast %cst_20 : f32 to vector<1x256xf32>
    %61 = arith.select %57, %55, %60 : vector<1x256xi1>, vector<1x256xf32>
    %62 = arith.addf %59, %61 : vector<1x256xf32>
    %c0_21 = arith.constant 0 : index
    %c0_22 = arith.constant 0 : index
    %c0_23 = arith.constant 0 : index
    %63 = vector.load %arg5[%c0_21, %c0_22, %c0_23] : memref<1x4x256xf32, #tpu.memory_space<vmem>>, vector<1x1x256xf32>
    %64 = vector.shape_cast %63 : vector<1x1x256xf32> to vector<1x256xf32>
    %65 = vector.shape_cast %62 : vector<1x256xf32> to vector<1x1x256xf32>
    tpu.vector_store %arg5[%c0_21, %c0_22, %c0_23], %65 {strides = array<i32>} : memref<1x4x256xf32, #tpu.memory_space<vmem>>, vector<1x1x256xf32>,
    %c0_24 = arith.constant 0 : index
    %c1 = arith.constant 1 : index
    %c0_25 = arith.constant 0 : index
    %66 = vector.load %arg5[%c0_24, %c1, %c0_25] : memref<1x4x256xf32, #tpu.memory_space<vmem>>, vector<1x1x256xf32>
    %67 = vector.shape_cast %66 : vector<1x1x256xf32> to vector<1x256xf32>
    %68 = arith.extui %57 : vector<1x256xi1> to vector<1x256xi32>
    %69 = arith.sitofp %68 : vector<1x256xi32> to vector<1x256xf32>
    %70 = arith.addf %67, %69 : vector<1x256xf32>
    %c0_26 = arith.constant 0 : index
    %c1_27 = arith.constant 1 : index
    %c0_28 = arith.constant 0 : index
    %71 = vector.load %arg5[%c0_26, %c1_27, %c0_28] : memref<1x4x256xf32, #tpu.memory_space<vmem>>, vector<1x1x256xf32>
    %72 = vector.shape_cast %71 : vector<1x1x256xf32> to vector<1x256xf32>
    %73 = vector.shape_cast %70 : vector<1x256xf32> to vector<1x1x256xf32>
    tpu.vector_store %arg5[%c0_26, %c1_27, %c0_28], %73 {strides = array<i32>} : memref<1x4x256xf32, #tpu.memory_space<vmem>>, vector<1x1x256xf32>,
    return
  }
  func.func @transform_0(%arg0: i32, %arg1: i32, %arg2: memref<2x1xi32, #tpu.memory_space<smem>>) -> (i32, i32, i32) {
    %c0_i32 = arith.constant 0 : i32
    %c0_i32_0 = arith.constant 0 : i32
    return %arg0, %c0_i32, %arg1 : i32, i32, i32
  }
  func.func @transform_1(%arg0: i32, %arg1: i32, %arg2: memref<2x1xi32, #tpu.memory_space<smem>>) -> (i32, i32, i32) {
    %c0_i32 = arith.constant 0 : i32
    %c0_i32_0 = arith.constant 0 : i32
    return %arg0, %c0_i32, %arg1 : i32, i32, i32
  }
  func.func @transform_2(%arg0: i32, %arg1: i32, %arg2: memref<2x1xi32, #tpu.memory_space<smem>>) -> (i32, i32, i32) {
    %c0_i32 = arith.constant 0 : i32
    %c0_i32_0 = arith.constant 0 : i32
    %c0_i32_1 = arith.constant 0 : i32
    return %arg0, %c0_i32, %c0_i32_0 : i32, i32, i32
  }
}

</mosaic_0001>

<llo_original>
// kernel: tpu_custom_call.1
$region0: #{tpu_custom_call.1}
  #allocation0 [shape = 'u32[]', space=smem, size = 0x4, offset = 0x4, fixed_abs, tag = 'smem constant byte address 0x4 - core index']
  #allocation1 [shape = 'u32[144,128]{1,0:T(1,128)}', space=vmem, size = 0x12000, scoped, tag = 'internal scratch']
  #allocation2 [shape = 's32[1]{0}', space=sflag, size = 0x4, scoped, tag = 'scoped memory for tpu_custom_call.1']
  #allocation3 [shape = 'u8[1024]{0}', space=smem, size = 0x400, scoped, tag = 'prefetched SMEM operand 0']
  %s0 = inlined_call_operand.vmem [shape: s32[2,1], index: 0, kind: input, shape index: {}]
  %s1 = inlined_call_operand.vmem [shape: f32[2,20,256], index: 1, kind: input, shape index: {}]
  %s2 = inlined_call_operand.vmem [shape: s32[2,1,256], index: 2, kind: input, shape index: {}]
  %s3 = inlined_call_operand.hbm [shape: f32[2,4,256], index: 3, kind: output, shape index: {}]
  %s4 = sld [smem:[#allocation0]]
  $region45: #{tpu_custom_call.1} parent=0
    _
  %s6 = ssub.s32 1, %s4
  %s7 = scalar_select 0, %s6, %s4
  %s8 = sshll.u32 %s0, 4
  %s9 = int_to_ptr.vmem [resolvable:$true] %s8
  %11 = dma.vmem_to_smem %s9, 32, [#allocation3], [#allocation2]
  %12 = dma.done [#allocation2], 32
  %13 = sfence
  $region1: #{tpu_custom_call.1} parent=0
    #allocation4 [shape = 'u8[8192]{0}', space=vmem, size = 0x2000, scoped, tag = 'output window, operand 0']
    #allocation5 [shape = 's32[2]{0}', space=sflag, size = 0x8, scoped, tag = 'scoped memory for tpu_custom_call.1']
    %14 = vsyncpa [#allocation5], 0
    %s15 = scalar_lea.sflag [#allocation5], 1
    %16 = vsyncpa %s15, 0
    loop: start=0, step=1, limit=4
    $region2: #{tpu_custom_call.1} parent=1 // loop_pre_header
      _
    $region3: #{tpu_custom_call.1} parent=1 // loop_header
      %s18 = sphi 0, %s22
      %p19 = scmp.ge.s32.totalorder %s18, 4
      %s25 = sphi 0, %s37
      %s26 = sphi 0, %s33
      %s27 = sphi 0, %s25
      %s28 = sphi 0, %s26
      %s29 = sphi 0, %s27
      %s30 = sphi 0, %s28
      %s42 = sphi 0, %s44
      %s45 = sphi 0, %s42
      %s46 = sphi 0, %s45
      %s62 = sphi 0, %s46
      %s70 = sphi 0, %s72
      %s73 = sphi 0, %s70
      %s74 = sphi 0, %s73
      %s90 = sphi 0, %s74
      %s96 = sphi 0, %s98
      %s99 = sphi 0, %s96
      %s100 = sphi 0, %s99
      %s116 = sphi 0, %s100
    $region4: #{tpu_custom_call.1} parent=1 // loop_header_branch
      %21 = sbr.rel (%p19) target = $region8
    $region5: #{tpu_custom_call.1} parent=1 // loop_body
      %s23 = ssub.s32 %s18, 1
      %s24 = ssub.s32 %s18, 2
      %s31 = sadd.s32 1, %s26
      %p32 = scmp.ge.s32.totalorder %s31, 1
      %s33 = scalar_select %p32, 0, %s31
      %s34 = sadd.s32 1, %s25
      %s35 = scalar_select %p32, %s34, %s25
      %p36 = scmp.ge.s32.totalorder %s35, 2
      %s37 = scalar_select %p36, 0, %s35
      %s38 = ssub.s32 %s25, %s37
      %s39 = ssub.s32 %s26, %s33
      %s40 = sor.u32 %s38, %s39
      %p41 = scmp.eq.s32.totalorder %s40, 0
      %s43 = sadd.s32 %s42, 1
      %s44 = scalar_select %p41, %s42, %s43
      %p47 = pneg %p41
      %p48 = scmp.eq.s32.totalorder %s18, 1
      %p49 = por %p47, %p48
      %p50 = scmp.ne.s32.totalorder %s42, %s45
      %p51 = scmp.eq.s32.totalorder %s18, 0
      %p52 = por %p50, %p51
      %p53 = scmp.ne.s32.totalorder %s42, %s45
      %p54 = scmp.eq.s32.totalorder %s23, 1
      %p55 = por %p53, %p54
      %p56 = scmp.ne.s32.totalorder %s45, %s46
      %p57 = scmp.eq.s32.totalorder %s23, 0
      %p58 = por %p56, %p57
      %p59 = scmp.ne.s32.totalorder %s45, %s46
      %p60 = scmp.eq.s32.totalorder %s24, 1
      %p61 = por %p59, %p60
      %p63 = scmp.ne.s32.totalorder %s46, %s62
      %p64 = scmp.eq.s32.totalorder %s24, 0
      %p65 = por %p63, %p64
      %s66 = ssub.s32 %s25, %s37
      %s67 = ssub.s32 %s26, %s33
      %s68 = sor.u32 %s66, %s67
      %p69 = scmp.eq.s32.totalorder %s68, 0
      %s71 = sadd.s32 %s70, 1
      %s72 = scalar_select %p69, %s70, %s71
      %p75 = pneg %p69
      %p76 = scmp.eq.s32.totalorder %s18, 1
      %p77 = por %p75, %p76
      %p78 = scmp.ne.s32.totalorder %s70, %s73
      %p79 = scmp.eq.s32.totalorder %s18, 0
      %p80 = por %p78, %p79
      %p81 = scmp.ne.s32.totalorder %s70, %s73
      %p82 = scmp.eq.s32.totalorder %s23, 1
      %p83 = por %p81, %p82
      %p84 = scmp.ne.s32.totalorder %s73, %s74
      %p85 = scmp.eq.s32.totalorder %s23, 0
      %p86 = por %p84, %p85
      %p87 = scmp.ne.s32.totalorder %s73, %s74
      %p88 = scmp.eq.s32.totalorder %s24, 1
      %p89 = por %p87, %p88
      %p91 = scmp.ne.s32.totalorder %s74, %s90
      %p92 = scmp.eq.s32.totalorder %s24, 0
      %p93 = por %p91, %p92
      %s94 = ssub.s32 %s25, %s37
      %p95 = scmp.eq.s32.totalorder %s94, 0
      %s97 = sadd.s32 %s96, 1
      %s98 = scalar_select %p95, %s96, %s97
      %p101 = pneg %p95
      %p102 = scmp.eq.s32.totalorder %s18, 1
      %p103 = por %p101, %p102
      %p104 = scmp.ne.s32.totalorder %s96, %s99
      %p105 = scmp.eq.s32.totalorder %s18, 0
      %p106 = por %p104, %p105
      %p107 = scmp.ne.s32.totalorder %s96, %s99
      %p108 = scmp.eq.s32.totalorder %s23, 1
      %p109 = por %p107, %p108
      %p110 = scmp.ne.s32.totalorder %s99, %s100
      %p111 = scmp.eq.s32.totalorder %s23, 0
      %p112 = por %p110, %p111
      %p113 = scmp.ne.s32.totalorder %s99, %s100
      %p114 = scmp.eq.s32.totalorder %s24, 1
      %p115 = por %p113, %p114
      %p117 = scmp.ne.s32.totalorder %s100, %s116
      %p118 = scmp.eq.s32.totalorder %s24, 0
      %p119 = por %p117, %p118
      %p120 = scmp.le.s32.totalorder 1, %s18
      %p121 = scmp.lt.s32.totalorder %s18, 3
      %p122 = pnand %p120, %p121
      %p123 = pneg %p122
      // Predicated region
      $region9: #{tpu_custom_call.1} parent=5 // pred_check
        _
      $region10: #{tpu_custom_call.1} parent=5 // pred_check_branch
        %125 = sbr.rel (%p122) target = $region12
      $region11: #{tpu_custom_call.1} parent=5 // pred_region
        %s126 = ssub.s32 %s18, 1
      $region12: #{tpu_custom_call.1} parent=5 // pred_fallthru
        _
      %p127 = scmp.lt.s32.totalorder %s18, 2
      // Predicated region
      $region13: #{tpu_custom_call.1} parent=5 // pred_check
        %p128 = pneg %p127
      $region14: #{tpu_custom_call.1} parent=5 // pred_check_branch
        %130 = sbr.rel (%p128) target = $region16
      $region15: #{tpu_custom_call.1} parent=5 // pred_region
        // Predicated region
        $region17: #{tpu_custom_call.1} parent=15 // pred_check
          %p131 = pneg %p52
        $region18: #{tpu_custom_call.1} parent=15 // pred_check_branch
          %133 = sbr.rel (%p131) target = $region20
        $region19: #{tpu_custom_call.1} parent=15 // pred_region
          %s134 = smul.u32 2, %s26
          %p135 = scmp.lt.s32.totalorder %s25, 1
          %s136 = scalar_select %p135, %s25, 1
          %p137 = scmp.lt.s32.totalorder %s134, 1
          %s138 = scalar_select %p137, %s134, 1
          %s139 = smul.addr %s136, 6
          %s140 = sadd.s32 %s138, %s139
          %s141 = smul.addr %s140, 8
          %s142 = scalar_lea.vmem %s1, %s141
          %s143 = smul.u32 2, %s26
        $region20: #{tpu_custom_call.1} parent=15 // pred_fallthru
          _
        // Predicated region
        $region21: #{tpu_custom_call.1} parent=15 // pred_check
          %p144 = pneg %p80
        $region22: #{tpu_custom_call.1} parent=15 // pred_check_branch
          %146 = sbr.rel (%p144) target = $region24
        $region23: #{tpu_custom_call.1} parent=15 // pred_region
          %s147 = smul.u32 2, %s26
          %p148 = scmp.lt.s32.totalorder %s25, 1
          %s149 = scalar_select %p148, %s25, 1
          %p150 = scmp.lt.s32.totalorder %s147, 1
          %s151 = scalar_select %p150, %s147, 1
          %s152 = smul.addr %s149, 2
          %s153 = sadd.s32 %s151, %s152
          %s154 = scalar_lea.vmem %s2, %s153
          %s155 = smul.u32 2, %s26
        $region24: #{tpu_custom_call.1} parent=15 // pred_fallthru
          _
      $region16: #{tpu_custom_call.1} parent=5 // pred_fallthru
        _
      %p156 = scmp.le.s32.totalorder 1, %s18
      %p157 = scmp.lt.s32.totalorder %s18, 3
      %p158 = pnand %p156, %p157
      %p159 = pneg %p158
      // Predicated region
      $region25: #{tpu_custom_call.1} parent=5 // pred_check
        _
      $region26: #{tpu_custom_call.1} parent=5 // pred_check_branch
        %161 = sbr.rel (%p158) target = $region28
      $region27: #{tpu_custom_call.1} parent=5 // pred_region
        %s162 = ssub.s32 %s18, 1
        %s163 = smul.u32 2, %s28
        %p164 = scmp.lt.s32.totalorder %s27, 1
        %s165 = scalar_select %p164, %s27, 1
        %p166 = scmp.lt.s32.totalorder %s163, 1
        %s167 = scalar_select %p166, %s163, 1
        %s168 = smul.addr %s165, 6
        %s169 = sadd.s32 %s167, %s168
        %s170 = smul.addr %s169, 8
        %s171 = scalar_lea.vmem %s1, %s170
        %p172 = pneg %p58
        %p173 = pneg %p55
        %s174 = smul.u32 2, %s28
        %p175 = scmp.lt.s32.totalorder %s27, 1
        %s176 = scalar_select %p175, %s27, 1
        %p177 = scmp.lt.s32.totalorder %s174, 1
        %s178 = scalar_select %p177, %s174, 1
        %s179 = smul.addr %s176, 2
        %s180 = sadd.s32 %s178, %s179
        %s181 = scalar_lea.vmem %s2, %s180
        %p182 = pneg %p86
        %p183 = pneg %p83
        %p184 = pneg %p112
        %p185 = pneg %p109
        %s186 = sand.u32 %s99, 1
        %s187 = scalar_lea.sflag [#allocation5], %s186
        %s188 = sand.u32 %s99, 1
        %s189 = smul.addr %s188, 8
        %s190 = scalar_lea.vmem [#allocation4], %s189
        %s191 = smul.u32 2, %s28
        %p192 = scmp.lt.s32.totalorder %s27, 1
        %s193 = scalar_select %p192, %s27, 1
        %p194 = scmp.lt.s32.totalorder %s191, 1
        %s195 = scalar_select %p194, %s191, 1
        %s196 = smul.addr %s193, 6
        %s197 = sadd.s32 %s195, %s196
        %s198 = smul.addr %s197, 8
        %s199 = scalar_lea.vmem %s1, %s198
        %s200 = smul.u32 2, %s28
        %s201 = smul.u32 2, %s28
        %p202 = scmp.lt.s32.totalorder %s27, 1
        %s203 = scalar_select %p202, %s27, 1
        %p204 = scmp.lt.s32.totalorder %s201, 1
        %s205 = scalar_select %p204, %s201, 1
        %s206 = smul.addr %s203, 2
        %s207 = sadd.s32 %s205, %s206
        %s208 = scalar_lea.vmem %s2, %s207
        %s209 = smul.u32 2, %s28
        %p210 = scmp.eq.s32.totalorder %s28, 0
        // Predicated region
        $region29: #{tpu_custom_call.1} parent=27 // pred_check
          %p211 = pneg %p210
        $region30: #{tpu_custom_call.1} parent=27 // pred_check_branch
          %213 = sbr.rel (%p211) target = $region32
        $region31: #{tpu_custom_call.1} parent=27 // pred_region
          %214 = vst [vmem:[%s190] sm:$0xff] 0.0
        $region32: #{tpu_custom_call.1} parent=27 // pred_fallthru
          _
        %v215 = vld [vmem:[%s199] sm:$0xff]
        %v216 = vld [vmem:[%s199 + $0x8] sm:$0xff]
        %v217 = vld [vmem:[%s199 + $0x10] sm:$0xff]
        %v218 = vld [vmem:[%s199 + $0x18] sm:$0xff]
        %v219 = vld [vmem:[%s199 + $0x20] sm:$0xf]
        %v220 = vld [vmem:[%s199 + $0x28] sm:$0xf]
        %v221 = vld [vmem:[%s208] sm:$0x3]
        %v222 = vlaneseq
        %v223 = vand.u32 %v222, 127
        %v224 = vadd.s32 %v223, 128
        %s225 = smul.u32 %s28, 256
        %v226 = vstv %s225
        %v227 = vadd.s32 %v223, %v226
        %v228 = vadd.s32 %v224, %v226
        %vm229 = vcmp.lt.s32.totalorder %v227, 256
        %vm230 = vcmp.lt.s32.totalorder %v228, 256
        %vm231 = vcmask 1043456
        %v232 = vsel %vm231, %v219, -inf
        %v233 = vmax.f32 %v215, %v232
        %v234 = vmax.f32 %v233, %v217
        %v235 = vrot.slane %v234, 4
        %v236 = vmax.f32 %v234, %v235
        %v237 = vrot.slane %v236, 2
        %v238 = vmax.f32 %v236, %v237
        %v239 = vrot.slane %v238, 1
        %v240 = vmax.f32 %v238, %v239
        %v241 = vsel %vm231, %v220, -inf
        %v242 = vmax.f32 %v216, %v241
        %v243 = vmax.f32 %v242, %v218
        %v244 = vrot.slane %v243, 4
        %v245 = vmax.f32 %v243, %v244
        %v246 = vrot.slane %v245, 2
        %v247 = vmax.f32 %v245, %v246
        %v248 = vrot.slane %v247, 1
        %v249 = vmax.f32 %v247, %v248
        %v250 = vsub.f32 %v215, %v240
        %v251 = vsub.f32 %v216, %v249
        %v252 = vsub.f32 %v217, %v240
        %v253 = vsub.f32 %v218, %v249
        %v254 = vsub.f32 %v219, %v240
        %v255 = vsub.f32 %v220, %v249
        %v256 = vmul.f32 %v250, 1.442695
        %v257 = vpow.pop %v256
        %v258 = vmul.f32 %v251, 1.442695
        %v259 = vpow.pop %v258
        %v260 = vmul.f32 %v252, 1.442695
        %v261 = vpow.pop %v260
        %v262 = vmul.f32 %v253, 1.442695
        %v263 = vpow.pop %v262
        %v264 = vmul.f32 %v254, 1.442695
        %v265 = vpow.pop %v264
        %v266 = vmul.f32 %v255, 1.442695
        %v267 = vpow.pop %v266
        %v268 = vadd.f32 %v257, %v261
        %v269 = vsel %vm231, %v265, 0.0
        %v270 = vadd.f32 %v268, %v269
        %v271 = vrot.slane %v270, 4
        %v272 = vadd.f32 %v270, %v271
        %v273 = vrot.slane %v272, 2
        %v274 = vadd.f32 %v272, %v273
        %v275 = vrot.slane %v274, 1
        %v276 = vadd.f32 %v274, %v275
        %v277 = vadd.f32 %v259, %v263
        %v278 = vsel %vm231, %v267, 0.0
        %v279 = vadd.f32 %v277, %v278
        %v280 = vrot.slane %v279, 4
        %v281 = vadd.f32 %v279, %v280
        %v282 = vrot.slane %v281, 2
        %v283 = vadd.f32 %v281, %v282
        %v284 = vrot.slane %v283, 1
        %v285 = vadd.f32 %v283, %v284
        %v286 = vrcp.pop %v276
        %v287 = vrcp.pop %v285
        %v288 = vmul.f32 %v257, %v286
        %v289 = vmul.f32 %v259, %v287
        %v290 = vmul.f32 %v261, %v286
        %v291 = vmul.f32 %v263, %v287
        %v292 = vmul.f32 %v265, %v286
        %v293 = vmul.f32 %v267, %v287
        %v294 = vmax.f32 %v288, 1e-07
        %v295 = vmax.f32 %v289, 1e-07
        %v296 = vmax.f32 %v290, 1e-07
        %v297 = vmax.f32 %v291, 1e-07
        %v298 = vmax.f32 %v292, 1e-07
        %v299 = vmax.f32 %v293, 1e-07
        %v300 = vlaneseq
        %v301 = vshrl.u32 %v300, 7
        %v302 = vadd.s32 %v301, 8
        %v303 = vadd.s32 %v301, 16
        %vm304 = vcmp.ne.s32.totalorder %v301, 5
        %vm305 = vcmp.ne.s32.totalorder %v302, 5
        %vm306 = vcmp.ne.s32.totalorder %v303, 5
        %v307 = vmul.f32 %v294, 1.442695
        %v308 = vpow.pop %v307
        %v309 = vmul.f32 %v295, 1.442695
        %v310 = vpow.pop %v309
        %v311 = vmul.f32 %v296, 1.442695
        %v312 = vpow.pop %v311
        %v313 = vmul.f32 %v297, 1.442695
        %v314 = vpow.pop %v313
        %v315 = vmul.f32 %v298, 1.442695
        %v316 = vpow.pop %v315
        %v317 = vmul.f32 %v299, 1.442695
        %v318 = vpow.pop %v317
        %v319 = vsel %vm304, %v308, 0.0
        %v320 = vsel %vm304, %v310, 0.0
        %v321 = vsel %vm305, %v312, 0.0
        %v322 = vsel %vm305, %v314, 0.0
        %v323 = vsel %vm306, %v316, 0.0
        %v324 = vsel %vm306, %v318, 0.0
        %v325 = vadd.f32 %v319, %v321
        %v326 = vsel %vm231, %v323, 0.0
        %v327 = vadd.f32 %v325, %v326
        %v328 = vrot.slane %v327, 4
        %v329 = vadd.f32 %v327, %v328
        %v330 = vrot.slane %v329, 2
        %v331 = vadd.f32 %v329, %v330
        %v332 = vrot.slane %v331, 1
        %v333 = vadd.f32 %v331, %v332
        %v334 = vadd.f32 %v320, %v322
        %v335 = vsel %vm231, %v324, 0.0
        %v336 = vadd.f32 %v334, %v335
        %v337 = vrot.slane %v336, 4
        %v338 = vadd.f32 %v336, %v337
        %v339 = vrot.slane %v338, 2
        %v340 = vadd.f32 %v338, %v339
        %v341 = vrot.slane %v340, 1
        %v342 = vadd.f32 %v340, %v341
        %v343 = vlog2.pop %v333
        %v344 = vmul.f32 %v343, 0.6931472
        %v345 = vlog2.pop %v342
        %v346 = vmul.f32 %v345, 0.6931472
        %v347 = vmul.f32 %v344, %v344
        %v348 = vmul.f32 %v346, %v346
        %v349 = vrcp.pop %v347
        %v350 = vrcp.pop %v348
        %v351 = vmul.f32 %v294, %v349
        %v352 = vmul.f32 %v295, %v350
        %vm353 = vcmp.eq.s32.totalorder %v221, 255
        %v354 = vsel %vm353, 0, %v221
        %vm355 = vcmp.ge.s32.totalorder %v354, 5
        %v356 = vsel %vm355, 1, 0
        %v357 = vadd.s32 %v354, %v356
        %v358 = vlaneseq
        %v359 = vshrl.u32 %v358, 7
        %v360 = vsub.s32 0, %v359
        %v361 = vrot.slane %v357, %v360
        %v362 = vlaneseq
        %v363 = vshrl.u32 %v362, 7
        %v364 = vsub.s32 1, %v363
        %v365 = vrot.slane %v357, %v364
        %vm366 = vcmp.eq.s32.totalorder %v301, %v361
        %vm367 = vcmp.eq.s32.totalorder %v301, %v365
        %vm368 = vcmp.eq.s32.totalorder %v302, %v361
        %vm369 = vcmp.eq.s32.totalorder %v302, %v365
        %vm370 = vcmp.eq.s32.totalorder %v303, %v361
        %vm371 = vcmp.eq.s32.totalorder %v303, %v365
        %v372 = vsel %vm366, %v294, 0.0
        %v373 = vsel %vm367, %v295, 0.0
        %v374 = vsel %vm368, %v296, 0.0
        %v375 = vsel %vm369, %v297, 0.0
        %v376 = vsel %vm370, %v298, 0.0
        %v377 = vsel %vm371, %v299, 0.0
        %v378 = vadd.f32 %v372, %v374
        %v379 = vsel %vm231, %v376, 0.0
        %v380 = vadd.f32 %v378, %v379
        %v381 = vrot.slane %v380, 4
        %v382 = vadd.f32 %v380, %v381
        %v383 = vrot.slane %v382, 2
        %v384 = vadd.f32 %v382, %v383
        %v385 = vrot.slane %v384, 1
        %v386 = vadd.f32 %v384, %v385
        %v387 = vadd.f32 %v373, %v375
        %v388 = vsel %vm231, %v377, 0.0
        %v389 = vadd.f32 %v387, %v388
        %v390 = vrot.slane %v389, 4
        %v391 = vadd.f32 %v389, %v390
        %v392 = vrot.slane %v391, 2
        %v393 = vadd.f32 %v391, %v392
        %v394 = vrot.slane %v393, 1
        %v395 = vadd.f32 %v393, %v394
        %v396 = vadd.f32 %v386, %v351
        %v397 = vadd.f32 %v395, %v352
        %v398 = vmax.f32 %v396, 1e-30
        %v399 = vmax.f32 %v397, 1e-30
        %v400 = vlog2.pop %v398
        %v401 = vmul.f32 %v400, 0.6931472
        %v402 = vlog2.pop %v399
        %v403 = vmul.f32 %v402, 0.6931472
        %vm404 = vmxor %vm353, 1
        %v405 = vsel %vm229, 1, 0
        %v406 = vsel %vm230, 1, 0
        %v407 = vcombine.low %v405, %v406
        %v409 = vunpack.c.l.s4 1966171168
        %v410 = vunpack.c.0.s8 %v409
        %v411 = vlaneseq
        %v412 = vshrl.u32 %v411, 7
        %v413 = vsub.s32 %v410, %v412
        %v414 = vrot.slane %v407, %v413
        %v416 = vunpack.c.l.s4 1966171168
        %v417 = vunpack.c.0.s8 %v416
        %v418 = vlaneseq
        %v419 = vshrl.u32 %v418, 7
        %v420 = vsub.s32 %v417, %v419
        %v421 = vrot.slane %v414, %v420
        %vm422 = vcmp.ne.s32.totalorder %v421, 0
        %vm423 = vmand %vm404, %vm422
        %v424 = vld [vmem:[%s190] ss:$4 sm:$0x3]
        %v427 = vcombine.high %v401, %v403
        %v429 = vunpack.c.l.s4 1966171168
        %v430 = vunpack.c.0.s8 %v429
        %v431 = vlaneseq
        %v432 = vshrl.u32 %v431, 7
        %v433 = vsub.s32 %v430, %v432
        %v434 = vrot.slane %v427, %v433
        %v435 = vcombine.high %v434, %v434
        %v437 = vunpack.c.l.s4 1966171168
        %v438 = vunpack.c.0.s8 %v437
        %v439 = vlaneseq
        %v440 = vshrl.u32 %v439, 7
        %v441 = vsub.s32 %v438, %v440
        %v442 = vrot.slane %v435, %v441
        %v444 = vsel %vm423, %v442, 0.0
        %v445 = vadd.f32 %v424, %v444
        %v446 = vlaneseq
        %vm447 = vcmp.ge.s32.totalorder %v446, 0
        %vm448 = vcmp.lt.s32.totalorder %v446, 256
        %vm449 = vmand %vm447, %vm448
        %450 = vst.msk [vmem:[%s190] ss:$4 sm:$0x3] %vm449, %v445
        %s451 = scalar_lea.vmem %s190, 1 [#allocation4]
        %v452 = vld [vmem:[%s451] ss:$4 sm:$0x3]
        %v453 = vsel %vm423, 1, 0
        %v454 = vcvt.s32.f32 %v453
        %v455 = vadd.f32 %v452, %v454
        %456 = vst.msk [vmem:[%s451] ss:$4 sm:$0x3] %vm449, %v455
        %s457 = sand.u32 %s99, 1
        %s458 = scalar_lea.sflag [#allocation5], %s457
        %s459 = sand.u32 %s99, 1
        %s460 = smul.addr %s459, 8
        %s461 = scalar_lea.vmem [#allocation4], %s460
        // Predicated region
        $region33: #{tpu_custom_call.1} parent=27 // pred_check
          %p462 = pneg %p109
        $region34: #{tpu_custom_call.1} parent=27 // pred_check_branch
          %464 = sbr.rel (%p462) target = $region36
        $region35: #{tpu_custom_call.1} parent=27 // pred_region
          %s466 = ssub.s32 128, 128
          %467 = vsyncadd %s458, %s466
          %s468 = smul.addr %s27, 2
          %s469 = smul.addr %s468, 64
          %s470 = scalar_lea.hbm %s3, %s469
          %s472 = sshll.u32 %s461, 4
          %s473 = int_to_ptr.vmem [resolvable:$true] %s472
          %475 = dma.vmem_to_hbm [thread:$0]  %s473, 128, %s470, %s458
        $region36: #{tpu_custom_call.1} parent=27 // pred_fallthru
          _
      $region28: #{tpu_custom_call.1} parent=5 // pred_fallthru
        _
      %p476 = scmp.le.s32.totalorder 2, %s18
      // Predicated region
      $region37: #{tpu_custom_call.1} parent=5 // pred_check
        %p477 = pneg %p476
      $region38: #{tpu_custom_call.1} parent=5 // pred_check_branch
        %479 = sbr.rel (%p477) target = $region40
      $region39: #{tpu_custom_call.1} parent=5 // pred_region
        %s480 = ssub.s32 %s18, 2
        // Predicated region
        $region41: #{tpu_custom_call.1} parent=39 // pred_check
          %p481 = pneg %p115
        $region42: #{tpu_custom_call.1} parent=39 // pred_check_branch
          %483 = sbr.rel (%p481) target = $region44
        $region43: #{tpu_custom_call.1} parent=39 // pred_region
          %s484 = sand.u32 %s100, 1
          %s485 = scalar_lea.sflag [#allocation5], %s484
          %s486 = sand.u32 %s100, 1
          %s487 = smul.addr %s486, 8
          %s488 = scalar_lea.vmem [#allocation4], %s487
          %489 = dma.done %s485, 128
        $region44: #{tpu_custom_call.1} parent=39 // pred_fallthru
          _
      $region40: #{tpu_custom_call.1} parent=5 // pred_fallthru
        _
    $region6: #{tpu_custom_call.1} parent=1 // loop_footer
      %s22 = sadd.s32 1, %s18
    $region7: #{tpu_custom_call.1} parent=1 // loop_footer_branch
      %17 = sbr.rel target = $region3
    $region8: #{tpu_custom_call.1} parent=1 // loop_exit
      _
    %490 = vsyncpa [#allocation5], 1
    %s491 = scalar_lea.sflag [#allocation5], 1
    %492 = vsyncpa %s491, 1

</llo_original>
